<compile_context>
chip_gen: v7x
topology: tpu7x:2x2x1
jax: 0.10.0
libtpu: 0.0.40
codegen_flags: <defaults>
</compile_context>

<pallas_src>
import numpy as np
import jax
import jax.numpy as jnp
from jax.experimental import pallas as pl
from jax.experimental.pallas import tpu as pltpu


def _round_up(x, m):
    return ((x + m - 1) // m) * m


# ----------------------------------------------------------------------------
# Pallas kernel: Freudenthal edge stencil on the padded image.
#   plane 0: horizontal edges   f = min(x[i, j], x[i, j+1])
#   plane 1: vertical edges     f = min(x[i, j], x[i+1, j])
#   plane 2: diagonal edges     f = min(x[i, j], x[i+1, j+1])
# Wrap-around garbage from the rolls lands only in the last valid row/column
# of a plane, which the host/jit valid-window slice (H-1 / W-1) never reads.
# ----------------------------------------------------------------------------
def _edge_filt_kernel(img_ref, out_ref):
    x = img_ref[...]                       # (Hpad, Wpad) f32
    r = jnp.roll(x, -1, axis=1)            # r[i, j]  = x[i, j+1]
    d = jnp.roll(x, -1, axis=0)            # d[i, j]  = x[i+1, j]
    dr = jnp.roll(r, -1, axis=0)           # dr[i, j] = x[i+1, j+1]
    out_ref[0, :, :] = jnp.minimum(x, r)
    out_ref[1, :, :] = jnp.minimum(x, d)
    out_ref[2, :, :] = jnp.minimum(x, dr)
    # TODO(synk): if H1 is ever implemented, also emit the two triangle planes
    # min(x, r, dr) and min(x, d, dr) here (reusing the partial minima above).


def _build_filtration_fn(H, W):
    """One fused jit: pad -> Pallas stencil -> valid-window slice -> flatten."""
    Hpad = _round_up(max(H, 8), 8)
    Wpad = _round_up(max(W, 128), 128)

    # 1 input + 3 output planes resident in VMEM (gridless, no double buffer).
    vmem_bytes = 4 * Hpad * Wpad * 4
    vmem_limit = int(min(max(2 * vmem_bytes + (1 << 20), 32 << 20), 64 << 20))
    # TODO(synk): for very large images (v7x: 64 MiB VMEM, 2 TCs) switch to a
    # row-tiled "parallel" grid with an explicit +1-row halo instead of just
    # raising the scoped-VMEM limit.

    filt_call = pl.pallas_call(
        _edge_filt_kernel,
        out_shape=jax.ShapeDtypeStruct((3, Hpad, Wpad), jnp.float32),
        in_specs=[pl.BlockSpec(memory_space=pltpu.MemorySpace.VMEM)],
        out_specs=pl.BlockSpec(memory_space=pltpu.MemorySpace.VMEM),
        compiler_params=pltpu.CompilerParams(vmem_limit_bytes=vmem_limit),
    )

    @jax.jit
    def filtration_values(img):
        imgf = img.astype(jnp.float32)
        pad = jnp.zeros((Hpad, Wpad), jnp.float32).at[:H, :W].set(imgf)
        planes = filt_call(pad)
        vert_vals = imgf.reshape(-1)                      # row-major: ind = i*W + j
        edge_vals = jnp.concatenate([
            planes[0, :H, : W - 1].reshape(-1),           # horizontal edges
            planes[1, : H - 1, :W].reshape(-1),           # vertical edges
            planes[2, : H - 1, : W - 1].reshape(-1),      # diagonal edges
        ])
        return vert_vals, edge_vals

    return filtration_values


# ----------------------------------------------------------------------------
# Host-side glue: H0 super-level-set persistence pairing (elder rule)
# ----------------------------------------------------------------------------
def h0_superlevel_pairs(vert_vals, edges, edge_vals):
    # TODO(synk): union-find is inherently sequential / data-dependent; runs
    # host-side in numpy (no Pallas equivalent).
    n = len(vert_vals)
    parent = np.arange(n)
    birth = vert_vals.astype(np.float64).copy()

    def find(x):
        while parent[x] != x:
            parent[x] = parent[parent[x]]
            x = parent[x]
        return x

    pairs = []
    order = np.argsort(-edge_vals, kind="stable")
    for e in order:
        u, v = edges[e]
        ru, rv = find(u), find(v)
        if ru == rv:
            continue
        bu, bv = birth[ru], birth[rv]
        if bu < bv:
            dead_birth, dead, surv = bu, ru, rv
        else:
            dead_birth, dead, surv = bv, rv, ru
        pairs.append((dead_birth, float(edge_vals[e])))
        parent[dead] = surv
        birth[surv] = max(bu, bv)
    # essential connected component: born at the global max, never dies
    pairs.append((float(vert_vals.max()), -np.inf))
    return np.asarray(pairs, dtype=np.float32).reshape(-1, 2)


def remove_filler(dgm, val=-np.inf):
    inds = dgm[:, 0] != val
    return dgm[inds, :]


# ----------------------------------------------------------------------------
# LevelSetLayer equivalent
# ----------------------------------------------------------------------------
class LevelSetLayerPallas:
    """Level-set (super-level-set) persistence layer, Freudenthal complex, maxdim=1."""

    def __init__(self, size, maxdim=1):
        self.size = size
        self.maxdim = maxdim
        width, height = size
        self.W, self.H = width, height
        self.N = width * height
        self._filtration_fn = _build_filtration_fn(height, width)

        # Edge list in canonical Freudenthal order (mirrors init_freudenthal_2d);
        # consumed by the host-side H0 union-find.
        edges = []
        for i in range(height):
            for j in range(width - 1):
                ind = i * width + j
                edges.append((ind, ind + 1))
        for i in range(height - 1):
            for j in range(width):
                ind = i * width + j
                edges.append((ind, ind + width))
        for i in range(height - 1):
            for j in range(width - 1):
                ind = i * width + j
                edges.append((ind, ind + width + 1))
        self.edges = np.asarray(edges, dtype=np.int32).reshape(-1, 2)

    def filtration_values(self, img):
        """img: (height, width) -> (vert_vals[H*W], edge_vals[E]) device arrays."""
        height, width = img.shape
        assert (width, height) == self.size
        return self._filtration_fn(img)

    def forward(self, img):
        vert_vals, edge_vals = jax.device_get(self.filtration_values(img))

        dgm0 = h0_superlevel_pairs(vert_vals, self.edges, edge_vals)
        # TODO(synk): H1 pairing requires dionysus-style boundary-matrix
        # reduction (data-dependent, sequential) — no clean Pallas equivalent.
        dgm1 = np.zeros((0, 2), dtype=np.float32)

        dgms = tuple(
            remove_filler(d, -np.inf) for d in (dgm0, dgm1)[: self.maxdim + 1]
        )
        return dgms, False


# ----------------------------------------------------------------------------
if __name__ == "__main__":
    key = jax.random.PRNGKey(0)
    H, W = 16, 16
    img = jax.random.uniform(key, (H, W), dtype=jnp.float32)

    layer = LevelSetLayerPallas(size=(W, H), maxdim=1)

    # --- run the fused TPU kernel once and check against a numpy reference ---
    vert_dev, edge_dev = layer.filtration_values(img)
    jax.block_until_ready((vert_dev, edge_dev))
    vert_vals, edge_vals = jax.device_get((vert_dev, edge_dev))

    x = np.asarray(img, dtype=np.float32)
    np.testing.assert_allclose(vert_vals, x.reshape(-1))
    edge_ref = np.concatenate([
        np.minimum(x[:, :-1], x[:, 1:]).reshape(-1),      # horizontal edges
        np.minimum(x[:-1, :], x[1:, :]).reshape(-1),       # vertical edges
        np.minimum(x[:-1, :-1], x[1:, 1:]).reshape(-1),    # diagonal edges
    ])
    np.testing.assert_allclose(edge_vals, edge_ref)
    assert edge_vals.shape[0] == layer.edges.shape[0]

    # --- full forward (H0 diagram) structural checks ---
    (dgm0, dgm1), issub = layer.forward(img)
    assert dgm0.ndim == 2 and dgm0.shape[1] == 2
    assert dgm1.shape == (0, 2)
    assert issub is False
    # every finite H0 bar: birth >= death (super-level-set persistence)
    finite = dgm0[np.isfinite(dgm0[:, 1])]
    assert np.all(finite[:, 0] >= finite[:, 1] - 1e-6)
    # exactly one essential H0 class, born at the global maximum
    ess = dgm0[~np.isfinite(dgm0[:, 1])]
    assert ess.shape[0] == 1 and np.isclose(ess[0, 0], x.max())

    print("KERNEL_OK")
</pallas_src>

<mosaic_0001>
module attributes {stable_mosaic.version = 11 : i64} {
  func.func @_edge_filt_kernel(%arg0: memref<16x128xf32, #tpu.memory_space<vmem>>, %arg1: memref<3x16x128xf32, #tpu.memory_space<vmem>>) attributes {dimension_semantics = [], scalar_prefetch = 0 : i64, scratch_operands = 0 : i64, tpu.core_type = #tpu.core_type<tc>} {
    %c0 = arith.constant 0 : index
    %c0_0 = arith.constant 0 : index
    %0 = vector.load %arg0[%c0, %c0_0] : memref<16x128xf32, #tpu.memory_space<vmem>>, vector<16x128xf32>
    %1 = vector.extract_strided_slice %0 {offsets = [0, 1], sizes = [16, 127], strides = [1, 1]} : vector<16x128xf32> to vector<16x127xf32>
    %2 = vector.extract_strided_slice %0 {offsets = [0, 0], sizes = [16, 1], strides = [1, 1]} : vector<16x128xf32> to vector<16x1xf32>
    %3 = tpu.concatenate %1, %2 in 1 : vector<16x127xf32>, vector<16x1xf32> -> vector<16x128xf32>
    %4 = vector.extract_strided_slice %0 {offsets = [1, 0], sizes = [15, 128], strides = [1, 1]} : vector<16x128xf32> to vector<15x128xf32>
    %5 = vector.extract_strided_slice %0 {offsets = [0, 0], sizes = [1, 128], strides = [1, 1]} : vector<16x128xf32> to vector<1x128xf32>
    %6 = tpu.concatenate %4, %5 in 0 : vector<15x128xf32>, vector<1x128xf32> -> vector<16x128xf32>
    %7 = vector.extract_strided_slice %3 {offsets = [1, 0], sizes = [15, 128], strides = [1, 1]} : vector<16x128xf32> to vector<15x128xf32>
    %8 = vector.extract_strided_slice %3 {offsets = [0, 0], sizes = [1, 128], strides = [1, 1]} : vector<16x128xf32> to vector<1x128xf32>
    %9 = tpu.concatenate %7, %8 in 0 : vector<15x128xf32>, vector<1x128xf32> -> vector<16x128xf32>
    %10 = arith.minimumf %0, %3 : vector<16x128xf32>
    %c0_1 = arith.constant 0 : index
    %c0_2 = arith.constant 0 : index
    %c0_3 = arith.constant 0 : index
    %11 = vector.load %arg1[%c0_1, %c0_2, %c0_3] : memref<3x16x128xf32, #tpu.memory_space<vmem>>, vector<1x16x128xf32>
    %12 = vector.shape_cast %11 : vector<1x16x128xf32> to vector<16x128xf32>
    %13 = vector.shape_cast %10 : vector<16x128xf32> to vector<1x16x128xf32>
    tpu.vector_store %arg1[%c0_1, %c0_2, %c0_3], %13 {strides = array<i32>} : memref<3x16x128xf32, #tpu.memory_space<vmem>>, vector<1x16x128xf32>,
    %14 = arith.minimumf %0, %6 : vector<16x128xf32>
    %c1 = arith.constant 1 : index
    %c0_4 = arith.constant 0 : index
    %c0_5 = arith.constant 0 : index
    %15 = vector.load %arg1[%c1, %c0_4, %c0_5] : memref<3x16x128xf32, #tpu.memory_space<vmem>>, vector<1x16x128xf32>
    %16 = vector.shape_cast %15 : vector<1x16x128xf32> to vector<16x128xf32>
    %17 = vector.shape_cast %14 : vector<16x128xf32> to vector<1x16x128xf32>
    tpu.vector_store %arg1[%c1, %c0_4, %c0_5], %17 {strides = array<i32>} : memref<3x16x128xf32, #tpu.memory_space<vmem>>, vector<1x16x128xf32>,
    %18 = arith.minimumf %0, %9 : vector<16x128xf32>
    %c2 = arith.constant 2 : index
    %c0_6 = arith.constant 0 : index
    %c0_7 = arith.constant 0 : index
    %19 = vector.load %arg1[%c2, %c0_6, %c0_7] : memref<3x16x128xf32, #tpu.memory_space<vmem>>, vector<1x16x128xf32>
    %20 = vector.shape_cast %19 : vector<1x16x128xf32> to vector<16x128xf32>
    %21 = vector.shape_cast %18 : vector<16x128xf32> to vector<1x16x128xf32>
    tpu.vector_store %arg1[%c2, %c0_6, %c0_7], %21 {strides = array<i32>} : memref<3x16x128xf32, #tpu.memory_space<vmem>>, vector<1x16x128xf32>,
    return
  }
}

</mosaic_0001>

<llo_original>
// kernel: squeeze.3
$region0: #{squeeze.3}
  %s0 = inlined_call_operand.vmem [shape: f32[1,16,15], index: 0, kind: input, shape index: {}]
  %s1 = inlined_call_operand.vmem [shape: f32[240], index: 1, kind: output, shape index: {}]
  $region1: #{squeeze.3} parent=0
    #allocation0 [shape = 'u8[4096]{0}', space=vmem, size = 0x1000, scoped, tag = 'scoped mem for output reshape']
    %v2 = vld [vmem:[%s0] sm:$0x1]
    %vm3 = vcmask 121856
    %4 = vst.msk [vmem:[#allocation0] sm:$0x1] %vm3, %v2
    %s5 = scalar_lea.vmem %s0, 8
    %v6 = vld [vmem:[%s5] sm:$0x1]
    %s7 = scalar_lea.vmem %s0, 8
    %v8 = vld [vmem:[%s7] sm:$0x1]
    %vm9 = vcmask 64512
    %v10 = vsel %vm9, %v8, %v6
    %11 = vrot.lane.b32.xlu0 %v10, 120
    %v12 = vpop.permute.xlu0 %11
    %vm13 = vcmask 56320
    %s14 = scalar_lea.vmem [#allocation0], 1
    %15 = vst.msk [vmem:[%s14] sm:$0x1] %vm13, %v12
    %vm16 = vcmask 1048512
    %17 = vst.msk [vmem:[#allocation0] sm:$0x1] %vm16, %v12
    %s18 = scalar_lea.vmem %s0, 7
    %v19 = vld [vmem:[%s18] sm:$0x1]
    %20 = vrot.lane.b32.xlu0 %v19, 105
    %v21 = vpop.permute.xlu0 %20
    %vm22 = vcmask 982856
    %23 = vst.msk [vmem:[#allocation0] sm:$0x1] %vm22, %v21
    %s24 = scalar_lea.vmem %s0, 15
    %v25 = vld [vmem:[%s24] sm:$0x1]
    %26 = vrot.lane.b32.xlu0 %v25, 97
    %v27 = vpop.permute.xlu0 %26
    %vm28 = vcmask 917256
    %s29 = scalar_lea.vmem [#allocation0], 1
    %30 = vst.msk [vmem:[%s29] sm:$0x1] %vm28, %v27
    %s31 = scalar_lea.vmem %s0, 6
    %v32 = vld [vmem:[%s31] sm:$0x1]
    %33 = vrot.lane.b32.xlu0 %v32, 90
    %v34 = vpop.permute.xlu0 %33
    %vm35 = vcmask 859856
    %36 = vst.msk [vmem:[#allocation0] sm:$0x1] %vm35, %v34
    %s37 = scalar_lea.vmem %s0, 14
    %v38 = vld [vmem:[%s37] sm:$0x1]
    %39 = vrot.lane.b32.xlu0 %v38, 82
    %v40 = vpop.permute.xlu0 %39
    %vm41 = vcmask 794256
    %s42 = scalar_lea.vmem [#allocation0], 1
    %43 = vst.msk [vmem:[%s42] sm:$0x1] %vm41, %v40
    %s44 = scalar_lea.vmem %s0, 5
    %v45 = vld [vmem:[%s44] sm:$0x1]
    %46 = vrot.lane.b32.xlu0 %v45, 75
    %v47 = vpop.permute.xlu0 %46
    %vm48 = vcmask 736856
    %49 = vst.msk [vmem:[#allocation0] sm:$0x1] %vm48, %v47
    %s50 = scalar_lea.vmem %s0, 13
    %v51 = vld [vmem:[%s50] sm:$0x1]
    %52 = vrot.lane.b32.xlu0 %v51, 67
    %v53 = vpop.permute.xlu0 %52
    %vm54 = vcmask 671256
    %s55 = scalar_lea.vmem [#allocation0], 1
    %56 = vst.msk [vmem:[%s55] sm:$0x1] %vm54, %v53
    %s57 = scalar_lea.vmem %s0, 4
    %v58 = vld [vmem:[%s57] sm:$0x1]
    %59 = vrot.lane.b32.xlu0 %v58, 60
    %v60 = vpop.permute.xlu0 %59
    %vm61 = vcmask 613856
    %62 = vst.msk [vmem:[#allocation0] sm:$0x1] %vm61, %v60
    %s63 = scalar_lea.vmem %s0, 12
    %v64 = vld [vmem:[%s63] sm:$0x1]
    %65 = vrot.lane.b32.xlu0 %v64, 52
    %v66 = vpop.permute.xlu0 %65
    %vm67 = vcmask 548256
    %s68 = scalar_lea.vmem [#allocation0], 1
    %69 = vst.msk [vmem:[%s68] sm:$0x1] %vm67, %v66
    %s70 = scalar_lea.vmem %s0, 3
    %v71 = vld [vmem:[%s70] sm:$0x1]
    %72 = vrot.lane.b32.xlu0 %v71, 45
    %v73 = vpop.permute.xlu0 %72
    %vm74 = vcmask 490856
    %75 = vst.msk [vmem:[#allocation0] sm:$0x1] %vm74, %v73
    %s76 = scalar_lea.vmem %s0, 11
    %v77 = vld [vmem:[%s76] sm:$0x1]
    %78 = vrot.lane.b32.xlu0 %v77, 37
    %v79 = vpop.permute.xlu0 %78
    %vm80 = vcmask 425256
    %s81 = scalar_lea.vmem [#allocation0], 1
    %82 = vst.msk [vmem:[%s81] sm:$0x1] %vm80, %v79
    %s83 = scalar_lea.vmem %s0, 2
    %v84 = vld [vmem:[%s83] sm:$0x1]
    %85 = vrot.lane.b32.xlu0 %v84, 30
    %v86 = vpop.permute.xlu0 %85
    %vm87 = vcmask 367856
    %88 = vst.msk [vmem:[#allocation0] sm:$0x1] %vm87, %v86
    %s89 = scalar_lea.vmem %s0, 10
    %v90 = vld [vmem:[%s89] sm:$0x1]
    %91 = vrot.lane.b32.xlu0 %v90, 22
    %v92 = vpop.permute.xlu0 %91
    %vm93 = vcmask 302256
    %s94 = scalar_lea.vmem [#allocation0], 1
    %95 = vst.msk [vmem:[%s94] sm:$0x1] %vm93, %v92
    %s96 = scalar_lea.vmem %s0, 1
    %v97 = vld [vmem:[%s96] sm:$0x1]
    %98 = vrot.lane.b32.xlu0 %v97, 15
    %v99 = vpop.permute.xlu0 %98
    %vm100 = vcmask 244856
    %101 = vst.msk [vmem:[#allocation0] sm:$0x1] %vm100, %v99
    %s102 = scalar_lea.vmem %s0, 9
    %v103 = vld [vmem:[%s102] sm:$0x1]
    %104 = vrot.lane.b32.xlu0 %v103, 7
    %v105 = vpop.permute.xlu0 %104
    %vm106 = vcmask 179256
    %s107 = scalar_lea.vmem [#allocation0], 1
    %108 = vst.msk [vmem:[%s107] sm:$0x1] %vm106, %v105
    %s110 = sshllo.u32 0, 2
    %v112 = vld [vmem:[#allocation0] sm:%s110]
    %s113 = sshllo.u32 0, 2
    %114 = vst [vmem:[%s1] sm:%s113] %v112

// kernel: squeeze.4
$region0: #{squeeze.4}
  %s0 = inlined_call_operand.vmem [shape: f32[1,15,16], index: 0, kind: input, shape index: {}]
  %s1 = inlined_call_operand.vmem [shape: f32[240], index: 1, kind: output, shape index: {}]
  $region1: #{squeeze.4} parent=0
    #allocation0 [shape = 'u8[4096]{0}', space=vmem, size = 0x1000, scoped, tag = 'scoped mem for output reshape']
    %s2 = smov 3
    %v3 = vld [vmem:[%s0] ss:$8 sm:%s2]
    %vm4 = vcmask 130048
    %5 = vst.msk [vmem:[#allocation0] sm:$0x3] %vm4, %v3
    %s6 = scalar_lea.vmem %s0, 7
    %v7 = vld [vmem:[%s6] sm:$0x1]
    %8 = vrot.lane.b32.xlu0 %v7, 112
    %v9 = vpop.permute.xlu0 %8
    %vm10 = vcmask 1048448
    %11 = vst.msk [vmem:[#allocation0] sm:$0x1] %vm10, %v9
    %s12 = scalar_lea.vmem %s0, 6
    %s13 = smov 3
    %v14 = vld [vmem:[%s12] ss:$8 sm:%s13]
    %15 = vrot.lane.b32.xlu0 %v14, 96
    %v16 = vpop.permute.xlu0 %15
    %vm17 = vcmask 917248
    %18 = vst.msk [vmem:[#allocation0] sm:$0x3] %vm17, %v16
    %s19 = scalar_lea.vmem %s0, 5
    %s20 = smov 3
    %v21 = vld [vmem:[%s19] ss:$8 sm:%s20]
    %22 = vrot.lane.b32.xlu0 %v21, 80
    %v23 = vpop.permute.xlu0 %22
    %vm24 = vcmask 786048
    %25 = vst.msk [vmem:[#allocation0] sm:$0x3] %vm24, %v23
    %s26 = scalar_lea.vmem %s0, 4
    %s27 = smov 3
    %v28 = vld [vmem:[%s26] ss:$8 sm:%s27]
    %29 = vrot.lane.b32.xlu0 %v28, 64
    %v30 = vpop.permute.xlu0 %29
    %vm31 = vcmask 654848
    %32 = vst.msk [vmem:[#allocation0] sm:$0x3] %vm31, %v30
    %s33 = scalar_lea.vmem %s0, 3
    %s34 = smov 3
    %v35 = vld [vmem:[%s33] ss:$8 sm:%s34]
    %36 = vrot.lane.b32.xlu0 %v35, 48
    %v37 = vpop.permute.xlu0 %36
    %vm38 = vcmask 523648
    %39 = vst.msk [vmem:[#allocation0] sm:$0x3] %vm38, %v37
    %s40 = scalar_lea.vmem %s0, 2
    %s41 = smov 3
    %v42 = vld [vmem:[%s40] ss:$8 sm:%s41]
    %43 = vrot.lane.b32.xlu0 %v42, 32
    %v44 = vpop.permute.xlu0 %43
    %vm45 = vcmask 392448
    %46 = vst.msk [vmem:[#allocation0] sm:$0x3] %vm45, %v44
    %s47 = scalar_lea.vmem %s0, 1
    %s48 = smov 3
    %v49 = vld [vmem:[%s47] ss:$8 sm:%s48]
    %50 = vrot.lane.b32.xlu0 %v49, 16
    %v51 = vpop.permute.xlu0 %50
    %vm52 = vcmask 261248
    %53 = vst.msk [vmem:[#allocation0] sm:$0x3] %vm52, %v51
    %s55 = sshllo.u32 0, 2
    %v57 = vld [vmem:[#allocation0] sm:%s55]
    %s58 = sshllo.u32 0, 2
    %59 = vst [vmem:[%s1] sm:%s58] %v57

// kernel: squeeze.5
$region0: #{squeeze.5}
  %s0 = inlined_call_operand.vmem [shape: f32[1,15,15], index: 0, kind: input, shape index: {}]
  %s1 = inlined_call_operand.vmem [shape: f32[225], index: 1, kind: output, shape index: {}]
  $region1: #{squeeze.5} parent=0
    #allocation0 [shape = 'u8[4096]{0}', space=vmem, size = 0x1000, scoped, tag = 'scoped mem for output reshape']
    %v2 = vld [vmem:[%s0] sm:$0x1]
    %vm3 = vcmask 121856
    %4 = vst.msk [vmem:[#allocation0] sm:$0x1] %vm3, %v2
    %s5 = scalar_lea.vmem %s0, 8
    %v6 = vld [vmem:[%s5] sm:$0x1]
    %s7 = scalar_lea.vmem %s0, 8
    %v8 = vld [vmem:[%s7] sm:$0x1]
    %vm9 = vcmask 64512
    %v10 = vsel %vm9, %v8, %v6
    %11 = vrot.lane.b32.xlu0 %v10, 120
    %v12 = vpop.permute.xlu0 %11
    %vm13 = vcmask 56320
    %s14 = scalar_lea.vmem [#allocation0], 1
    %15 = vst.msk [vmem:[%s14] sm:$0x1] %vm13, %v12
    %vm16 = vcmask 1048512
    %17 = vst.msk [vmem:[#allocation0] sm:$0x1] %vm16, %v12
    %s18 = scalar_lea.vmem %s0, 7
    %v19 = vld [vmem:[%s18] sm:$0x1]
    %20 = vrot.lane.b32.xlu0 %v19, 105
    %v21 = vpop.permute.xlu0 %20
    %vm22 = vcmask 982856
    %23 = vst.msk [vmem:[#allocation0] sm:$0x1] %vm22, %v21
    %s24 = scalar_lea.vmem %s0, 6
    %v25 = vld [vmem:[%s24] sm:$0x1]
    %26 = vrot.lane.b32.xlu0 %v25, 90
    %v27 = vpop.permute.xlu0 %26
    %vm28 = vcmask 859856
    %29 = vst.msk [vmem:[#allocation0] sm:$0x1] %vm28, %v27
    %s30 = scalar_lea.vmem %s0, 14
    %v31 = vld [vmem:[%s30] sm:$0x1]
    %32 = vrot.lane.b32.xlu0 %v31, 82
    %v33 = vpop.permute.xlu0 %32
    %vm34 = vcmask 794256
    %s35 = scalar_lea.vmem [#allocation0], 1
    %36 = vst.msk [vmem:[%s35] sm:$0x1] %vm34, %v33
    %s37 = scalar_lea.vmem %s0, 5
    %v38 = vld [vmem:[%s37] sm:$0x1]
    %39 = vrot.lane.b32.xlu0 %v38, 75
    %v40 = vpop.permute.xlu0 %39
    %vm41 = vcmask 736856
    %42 = vst.msk [vmem:[#allocation0] sm:$0x1] %vm41, %v40
    %s43 = scalar_lea.vmem %s0, 13
    %v44 = vld [vmem:[%s43] sm:$0x1]
    %45 = vrot.lane.b32.xlu0 %v44, 67
    %v46 = vpop.permute.xlu0 %45
    %vm47 = vcmask 671256
    %s48 = scalar_lea.vmem [#allocation0], 1
    %49 = vst.msk [vmem:[%s48] sm:$0x1] %vm47, %v46
    %s50 = scalar_lea.vmem %s0, 4
    %v51 = vld [vmem:[%s50] sm:$0x1]
    %52 = vrot.lane.b32.xlu0 %v51, 60
    %v53 = vpop.permute.xlu0 %52
    %vm54 = vcmask 613856
    %55 = vst.msk [vmem:[#allocation0] sm:$0x1] %vm54, %v53
    %s56 = scalar_lea.vmem %s0, 12
    %v57 = vld [vmem:[%s56] sm:$0x1]
    %58 = vrot.lane.b32.xlu0 %v57, 52
    %v59 = vpop.permute.xlu0 %58
    %vm60 = vcmask 548256
    %s61 = scalar_lea.vmem [#allocation0], 1
    %62 = vst.msk [vmem:[%s61] sm:$0x1] %vm60, %v59
    %s63 = scalar_lea.vmem %s0, 3
    %v64 = vld [vmem:[%s63] sm:$0x1]
    %65 = vrot.lane.b32.xlu0 %v64, 45
    %v66 = vpop.permute.xlu0 %65
    %vm67 = vcmask 490856
    %68 = vst.msk [vmem:[#allocation0] sm:$0x1] %vm67, %v66
    %s69 = scalar_lea.vmem %s0, 11
    %v70 = vld [vmem:[%s69] sm:$0x1]
    %71 = vrot.lane.b32.xlu0 %v70, 37
    %v72 = vpop.permute.xlu0 %71
    %vm73 = vcmask 425256
    %s74 = scalar_lea.vmem [#allocation0], 1
    %75 = vst.msk [vmem:[%s74] sm:$0x1] %vm73, %v72
    %s76 = scalar_lea.vmem %s0, 2
    %v77 = vld [vmem:[%s76] sm:$0x1]
    %78 = vrot.lane.b32.xlu0 %v77, 30
    %v79 = vpop.permute.xlu0 %78
    %vm80 = vcmask 367856
    %81 = vst.msk [vmem:[#allocation0] sm:$0x1] %vm80, %v79
    %s82 = scalar_lea.vmem %s0, 10
    %v83 = vld [vmem:[%s82] sm:$0x1]
    %84 = vrot.lane.b32.xlu0 %v83, 22
    %v85 = vpop.permute.xlu0 %84
    %vm86 = vcmask 302256
    %s87 = scalar_lea.vmem [#allocation0], 1
    %88 = vst.msk [vmem:[%s87] sm:$0x1] %vm86, %v85
    %s89 = scalar_lea.vmem %s0, 1
    %v90 = vld [vmem:[%s89] sm:$0x1]
    %91 = vrot.lane.b32.xlu0 %v90, 15
    %v92 = vpop.permute.xlu0 %91
    %vm93 = vcmask 244856
    %94 = vst.msk [vmem:[#allocation0] sm:$0x1] %vm93, %v92
    %s95 = scalar_lea.vmem %s0, 9
    %v96 = vld [vmem:[%s95] sm:$0x1]
    %97 = vrot.lane.b32.xlu0 %v96, 7
    %v98 = vpop.permute.xlu0 %97
    %vm99 = vcmask 179256
    %s100 = scalar_lea.vmem [#allocation0], 1
    %101 = vst.msk [vmem:[%s100] sm:$0x1] %vm99, %v98
    %s103 = sshllo.u32 0, 2
    %v105 = vld [vmem:[#allocation0] sm:%s103]
    %s106 = sshllo.u32 0, 2
    %107 = vst [vmem:[%s1] sm:%s106] %v105

// kernel: filtration_values.1
$region0: #{filtration_values.1}
  #allocation0 [shape = 'u32[]', space=smem, size = 0x4, offset = 0x4, fixed_abs, tag = 'smem constant byte address 0x4 - core index']
  #allocation1 [shape = 'u32[144,128]{1,0:T(1,128)}', space=vmem, size = 0x12000, scoped, tag = 'internal scratch']
  %s0 = inlined_call_operand.vmem [shape: f32[16,128], index: 0, kind: input, shape index: {}]
  %s1 = inlined_call_operand.vmem [shape: f32[3,16,128], index: 1, kind: output, shape index: {}]
  %s2 = sld [smem:[#allocation0]]
  $region14: #{filtration_values.1} parent=0
    _
  %s4 = ssub.s32 1, %s2
  %s5 = scalar_select 0, %s4, %s2
  // Predicated region
  $region2: #{filtration_values.1} parent=0 // pred_check
    _
  $region3: #{filtration_values.1} parent=0 // pred_check_branch
    %7 = sbr.rel (0) target = $region5
  $region4: #{filtration_values.1} parent=0 // pred_region
    _
  $region5: #{filtration_values.1} parent=0 // pred_fallthru
    _
  %v8 = vld [vmem:[%s0] sm:$0xff]
  %v9 = vld [vmem:[%s0 + $0x8] sm:$0xff]
  %12 = vrot.lane.b32.xlu0 %v8, 127
  %v13 = vpop.permute.xlu0 %12
  %14 = vrot.lane.b32.xlu0 %v9, 127
  %v15 = vpop.permute.xlu0 %14
  %vm18 = vcmask 1046528
  %v19 = vrot.slane %v8, 1
  %v20 = vrot.slane %v9, 1
  %v21 = vsel %vm18, %v19, %v20
  %v25 = vsel %vm18, %v20, %v19
  %v28 = vrot.slane %v13, 1
  %v29 = vrot.slane %v15, 1
  %v30 = vsel %vm18, %v28, %v29
  %v34 = vsel %vm18, %v29, %v28
  %v35 = vmin.f32 %v8, %v13
  %v36 = vmin.f32 %v9, %v15
  %37 = vst [vmem:[%s1] sm:$0xff] %v35
  %38 = vst [vmem:[%s1 + $0x8] sm:$0xff] %v36
  %v39 = vmin.f32 %v8, %v21
  %v40 = vmin.f32 %v9, %v25
  %s41 = scalar_lea.vmem %s1, 16
  %42 = vst [vmem:[%s41] sm:$0xff] %v39
  %43 = vst [vmem:[%s41 + $0x8] sm:$0xff] %v40
  %v44 = vmin.f32 %v8, %v30
  %v45 = vmin.f32 %v9, %v34
  %s46 = scalar_lea.vmem %s1, 32
  %47 = vst [vmem:[%s46] sm:$0xff] %v44
  %48 = vst [vmem:[%s46 + $0x8] sm:$0xff] %v45
  // Predicated region
  $region6: #{filtration_values.1} parent=0 // pred_check
    _
  $region7: #{filtration_values.1} parent=0 // pred_check_branch
    %50 = sbr.rel (0) target = $region9
  $region8: #{filtration_values.1} parent=0 // pred_region
    _
  $region9: #{filtration_values.1} parent=0 // pred_fallthru
    _
  // Predicated region
  $region10: #{filtration_values.1} parent=0 // pred_check
    _
  $region11: #{filtration_values.1} parent=0 // pred_check_branch
    %52 = sbr.rel (0) target = $region13
  $region12: #{filtration_values.1} parent=0 // pred_region
    _
  $region13: #{filtration_values.1} parent=0 // pred_fallthru
    _

</llo_original>
